<compile_context>
chip_gen: v7x
topology: tpu7x:2x2x1
jax: 0.10.0
libtpu: 0.0.40
codegen_flags: <defaults>
</compile_context>

<pallas_src>
import functools

import jax
import jax.numpy as jnp
from jax.experimental import pallas as pl
from jax.experimental.pallas import tpu as pltpu


LANE = 128  # TPU vreg lane width


def _round_up(x, m):
    return ((x + m - 1) // m) * m


def qfunction_kernel(x_ref, w1_ref, b1_ref, w2_ref, b2_ref, out_ref):
    # ---- Layer 1 on the VPU (contraction depth is only 2) -------------------
    x0 = x_ref[:, 0:1]                      # (TB, 1)
    x1 = x_ref[:, 1:2]                      # (TB, 1)
    h = jnp.tanh(
        x0 * w1_ref[0:1, :] + x1 * w1_ref[1:2, :] + b1_ref[...]
    )                                        # (TB, H_PAD) -- full 128 lanes
    # ---- Layer 2 on the MXU: (TB,128) @ (128,128) is a real MXU shape -------
    o = jnp.dot(h, w2_ref[...], preferred_element_type=jnp.float32)
    out_ref[...] = (o + b2_ref[...]).astype(out_ref.dtype)


@functools.partial(jax.jit, static_argnames=("block_b",))
def qfunction_forward(x, w1, b1, w2, b2, *, block_b=256):
    """out = tanh(x @ w1 + b1) @ w2 + b2, run as one Pallas kernel.

    x : (B, 2) f32, w1 : (2, H), b1 : (1, H), w2 : (H, A), b2 : (1, A).
    """
    B, in_dim = x.shape
    hidden = w1.shape[1]
    A = w2.shape[1]

    # Lane-dense padded widths (zero padding keeps exact equivalence:
    # tanh(0 + 0) = 0 and zero hidden columns hit zero w2 rows).
    h_pad = _round_up(hidden, LANE)
    a_pad = _round_up(A, LANE)

    w1p = jnp.zeros((in_dim, h_pad), jnp.float32).at[:, :hidden].set(w1)
    b1p = jnp.zeros((1, h_pad), jnp.float32).at[:, :hidden].set(
        b1.reshape(1, hidden))
    w2p = jnp.zeros((h_pad, a_pad), jnp.float32).at[:hidden, :A].set(w2)
    b2p = jnp.zeros((1, a_pad), jnp.float32).at[:, :A].set(b2.reshape(1, A))

    # Batch tile: multiple of 8 sublanes, capped at block_b.
    tb = min(block_b, _round_up(B, 8))
    b_pad = _round_up(B, tb)
    xp = jnp.zeros((b_pad, in_dim), jnp.float32).at[:B, :].set(x)

    grid = (b_pad // tb,)

    cost = pl.CostEstimate(
        flops=2 * B * (in_dim * hidden + hidden * A),
        transcendentals=B * hidden,
        bytes_accessed=4 * (B * in_dim + in_dim * hidden + hidden
                            + hidden * A + A + B * A),
    )

    out = pl.pallas_call(
        qfunction_kernel,
        out_shape=jax.ShapeDtypeStruct((b_pad, a_pad), jnp.float32),
        grid=grid,
        in_specs=[
            pl.BlockSpec((tb, in_dim), lambda i: (i, 0)),      # x tile
            pl.BlockSpec((in_dim, h_pad), lambda i: (0, 0)),   # w1 (resident)
            pl.BlockSpec((1, h_pad), lambda i: (0, 0)),        # b1 (resident)
            pl.BlockSpec((h_pad, a_pad), lambda i: (0, 0)),    # w2 (resident)
            pl.BlockSpec((1, a_pad), lambda i: (0, 0)),        # b2 (resident)
        ],
        out_specs=pl.BlockSpec((tb, a_pad), lambda i: (i, 0)),
        compiler_params=pltpu.CompilerParams(
            dimension_semantics=("parallel",),
        ),
        cost_estimate=cost,
    )(xp, w1p, b1p, w2p, b2p)

    return out[:B, :A]


def init_params(key, in_dim=2, hidden=40, n_actions=5):
    """Deterministic init matching nn.Linear's default U(-1/sqrt(fan_in), +)."""
    k1, k2, k3, k4 = jax.random.split(key, 4)
    bound1 = 1.0 / jnp.sqrt(in_dim)
    bound2 = 1.0 / jnp.sqrt(hidden)
    w1 = jax.random.uniform(k1, (in_dim, hidden), jnp.float32, -bound1, bound1)
    b1 = jax.random.uniform(k2, (1, hidden), jnp.float32, -bound1, bound1)
    w2 = jax.random.uniform(k3, (hidden, n_actions), jnp.float32, -bound2, bound2)
    b2 = jax.random.uniform(k4, (1, n_actions), jnp.float32, -bound2, bound2)
    return w1, b1, w2, b2


if __name__ == "__main__":
    key = jax.random.PRNGKey(0)
    key_x, key_p = jax.random.split(key)

    # env.action_space.n for the unbalanced-disk env -> 5 discrete actions
    B, IN, HID, A = 8, 2, 40, 5

    # Observations: [angle (rad, rounded to 0.1), angular velocity]
    x = jax.random.uniform(key_x, (B, IN), jnp.float32, -3.2, 3.2)

    w1, b1, w2, b2 = init_params(key_p, IN, HID, A)

    out = qfunction_forward(x, w1, b1, w2, b2)
    out = jax.block_until_ready(out)

    # Reference check in plain JAX
    ref = jnp.tanh(x @ w1 + b1) @ w2 + b2
    assert out.shape == (B, A)
    assert jnp.allclose(out, ref, atol=1e-5, rtol=1e-5)

    print("KERNEL_OK")
</pallas_src>

<mosaic_0001>
module attributes {stable_mosaic.version = 11 : i64} {
  func.func @qfunction_kernel(%arg0: i32, %arg1: memref<8x2xf32, #tpu.memory_space<vmem>>, %arg2: memref<2x128xf32, #tpu.memory_space<vmem>>, %arg3: memref<1x128xf32, #tpu.memory_space<vmem>>, %arg4: memref<128x128xf32, #tpu.memory_space<vmem>>, %arg5: memref<1x128xf32, #tpu.memory_space<vmem>>, %arg6: memref<8x128xf32, #tpu.memory_space<vmem>>) attributes {dimension_semantics = [#tpu.dimension_semantics<parallel>], iteration_bounds = array<i64: 1>, scalar_prefetch = 0 : i64, scratch_operands = 0 : i64, tpu.core_type = #tpu.core_type<tc>, window_params = [{transform_indices = @transform_0, window_bounds = array<i64: 8, 2>}, {pipeline_mode = #tpu.pipeline_mode<synchronous>, transform_indices = @transform_1, window_bounds = array<i64: 2, 128>}, {pipeline_mode = #tpu.pipeline_mode<synchronous>, transform_indices = @transform_2, window_bounds = array<i64: 1, 128>}, {pipeline_mode = #tpu.pipeline_mode<synchronous>, transform_indices = @transform_3, window_bounds = array<i64: 128, 128>}, {pipeline_mode = #tpu.pipeline_mode<synchronous>, transform_indices = @transform_4, window_bounds = array<i64: 1, 128>}, {transform_indices = @transform_5, window_bounds = array<i64: 8, 128>}]} {
    %c0 = arith.constant 0 : index
    %c0_0 = arith.constant 0 : index
    %0 = vector.load %arg1[%c0, %c0_0] : memref<8x2xf32, #tpu.memory_space<vmem>>, vector<8x1xf32>
    %c0_1 = arith.constant 0 : index
    %c1 = arith.constant 1 : index
    %1 = vector.load %arg1[%c0_1, %c1] : memref<8x2xf32, #tpu.memory_space<vmem>>, vector<8x1xf32>
    %c0_2 = arith.constant 0 : index
    %c0_3 = arith.constant 0 : index
    %2 = vector.load %arg2[%c0_2, %c0_3] : memref<2x128xf32, #tpu.memory_space<vmem>>, vector<1x128xf32>
    %3 = vector.broadcast %0 : vector<8x1xf32> to vector<8x128xf32>
    %4 = vector.broadcast %2 : vector<1x128xf32> to vector<8x128xf32>
    %5 = arith.mulf %3, %4 : vector<8x128xf32>
    %c1_4 = arith.constant 1 : index
    %c0_5 = arith.constant 0 : index
    %6 = vector.load %arg2[%c1_4, %c0_5] : memref<2x128xf32, #tpu.memory_space<vmem>>, vector<1x128xf32>
    %7 = vector.broadcast %1 : vector<8x1xf32> to vector<8x128xf32>
    %8 = vector.broadcast %6 : vector<1x128xf32> to vector<8x128xf32>
    %9 = arith.mulf %7, %8 : vector<8x128xf32>
    %10 = arith.addf %5, %9 : vector<8x128xf32>
    %c0_6 = arith.constant 0 : index
    %c0_7 = arith.constant 0 : index
    %11 = vector.load %arg3[%c0_6, %c0_7] : memref<1x128xf32, #tpu.memory_space<vmem>>, vector<1x128xf32>
    %12 = vector.broadcast %11 : vector<1x128xf32> to vector<8x128xf32>
    %13 = arith.addf %10, %12 : vector<8x128xf32>
    %14 = math.tanh %13 : vector<8x128xf32>
    %c0_8 = arith.constant 0 : index
    %c0_9 = arith.constant 0 : index
    %15 = vector.load %arg4[%c0_8, %c0_9] : memref<128x128xf32, #tpu.memory_space<vmem>>, vector<128x128xf32>
    %cst = arith.constant dense<0.000000e+00> : vector<8x128xf32>
    %16 = tpu.matmul %14, %15, %cst {dimension_numbers = #tpu.dot_dimension_numbers<[1], [0], [0], [1], [0, 0, 1, 1], [], []>} : vector<8x128xf32>, vector<128x128xf32>, vector<8x128xf32> -> vector<8x128xf32>
    %c0_10 = arith.constant 0 : index
    %c0_11 = arith.constant 0 : index
    %17 = vector.load %arg5[%c0_10, %c0_11] : memref<1x128xf32, #tpu.memory_space<vmem>>, vector<1x128xf32>
    %18 = vector.broadcast %17 : vector<1x128xf32> to vector<8x128xf32>
    %19 = arith.addf %16, %18 : vector<8x128xf32>
    %c0_12 = arith.constant 0 : index
    %c0_13 = arith.constant 0 : index
    %20 = vector.load %arg6[%c0_12, %c0_13] : memref<8x128xf32, #tpu.memory_space<vmem>>, vector<8x128xf32>
    tpu.vector_store %arg6[%c0_12, %c0_13], %19 {strides = array<i32>} : memref<8x128xf32, #tpu.memory_space<vmem>>, vector<8x128xf32>,
    return
  }
  func.func @transform_0(%arg0: i32) -> (i32, i32) {
    %c0_i32 = arith.constant 0 : i32
    %c0_i32_0 = arith.constant 0 : i32
    return %arg0, %c0_i32 : i32, i32
  }
  func.func @transform_1(%arg0: i32) -> (i32, i32) {
    %c0_i32 = arith.constant 0 : i32
    %c0_i32_0 = arith.constant 0 : i32
    %c0_i32_1 = arith.constant 0 : i32
    return %c0_i32, %c0_i32_0 : i32, i32
  }
  func.func @transform_2(%arg0: i32) -> (i32, i32) {
    %c0_i32 = arith.constant 0 : i32
    %c0_i32_0 = arith.constant 0 : i32
    %c0_i32_1 = arith.constant 0 : i32
    return %c0_i32, %c0_i32_0 : i32, i32
  }
  func.func @transform_3(%arg0: i32) -> (i32, i32) {
    %c0_i32 = arith.constant 0 : i32
    %c0_i32_0 = arith.constant 0 : i32
    %c0_i32_1 = arith.constant 0 : i32
    return %c0_i32, %c0_i32_0 : i32, i32
  }
  func.func @transform_4(%arg0: i32) -> (i32, i32) {
    %c0_i32 = arith.constant 0 : i32
    %c0_i32_0 = arith.constant 0 : i32
    %c0_i32_1 = arith.constant 0 : i32
    return %c0_i32, %c0_i32_0 : i32, i32
  }
  func.func @transform_5(%arg0: i32) -> (i32, i32) {
    %c0_i32 = arith.constant 0 : i32
    %c0_i32_0 = arith.constant 0 : i32
    return %arg0, %c0_i32 : i32, i32
  }
}

</mosaic_0001>

<llo_original>
// kernel: qfunction_forward.1
$region0: #{qfunction_forward.1}
  #allocation0 [shape = 'u32[]', space=smem, size = 0x4, offset = 0x4, fixed_abs, tag = 'smem constant byte address 0x4 - core index']
  #allocation1 [shape = 'u32[144,128]{1,0:T(1,128)}', space=vmem, size = 0x12000, scoped, tag = 'internal scratch']
  %s0 = inlined_call_operand.vmem [shape: f32[8,2], index: 0, kind: input, shape index: {}]
  %s1 = inlined_call_operand.vmem [shape: f32[2,128], index: 1, kind: input, shape index: {}]
  %s2 = inlined_call_operand.vmem [shape: f32[1,128], index: 2, kind: input, shape index: {}]
  %s3 = inlined_call_operand.vmem [shape: f32[128,128], index: 3, kind: input, shape index: {}]
  %s4 = inlined_call_operand.vmem [shape: f32[1,128], index: 4, kind: input, shape index: {}]
  %s5 = inlined_call_operand.hbm [shape: f32[8,128], index: 5, kind: output, shape index: {}]
  %s6 = sld [smem:[#allocation0]]
  $region30: #{qfunction_forward.1} parent=0
    _
  %s8 = ssub.s32 1, %s6
  %s9 = scalar_select 0, %s8, %s6
  $region1: #{qfunction_forward.1} parent=0
    #allocation2 [shape = 'u8[4096]{0}', space=vmem, size = 0x1000, scoped, tag = 'output window, operand 0, single buffered']
    #allocation3 [shape = 's32[1]{0}', space=sflag, size = 0x4, scoped, tag = 'scoped memory for qfunction_forward.1']
    %10 = vsyncpa [#allocation3], 0
    // Predicated region
    $region2: #{qfunction_forward.1} parent=1 // pred_check
      _
    $region3: #{qfunction_forward.1} parent=1 // pred_check_branch
      %12 = sbr.rel (0) target = $region5
    $region4: #{qfunction_forward.1} parent=1 // pred_region
      _
    $region5: #{qfunction_forward.1} parent=1 // pred_fallthru
      _
    // Predicated region
    $region6: #{qfunction_forward.1} parent=1 // pred_check
      _
    $region7: #{qfunction_forward.1} parent=1 // pred_check_branch
      %14 = sbr.rel (0) target = $region9
    $region8: #{qfunction_forward.1} parent=1 // pred_region
      _
    $region9: #{qfunction_forward.1} parent=1 // pred_fallthru
      _
    // Predicated region
    $region10: #{qfunction_forward.1} parent=1 // pred_check
      _
    $region11: #{qfunction_forward.1} parent=1 // pred_check_branch
      %16 = sbr.rel (0) target = $region13
    $region12: #{qfunction_forward.1} parent=1 // pred_region
      _
    $region13: #{qfunction_forward.1} parent=1 // pred_fallthru
      _
    // Predicated region
    $region14: #{qfunction_forward.1} parent=1 // pred_check
      _
    $region15: #{qfunction_forward.1} parent=1 // pred_check_branch
      %18 = sbr.rel (0) target = $region17
    $region16: #{qfunction_forward.1} parent=1 // pred_region
      _
    $region17: #{qfunction_forward.1} parent=1 // pred_fallthru
      _
    // Predicated region
    $region18: #{qfunction_forward.1} parent=1 // pred_check
      _
    $region19: #{qfunction_forward.1} parent=1 // pred_check_branch
      %20 = sbr.rel (0) target = $region21
    $region20: #{qfunction_forward.1} parent=1 // pred_region
      _
    $region21: #{qfunction_forward.1} parent=1 // pred_fallthru
      _
    %v21 = vld [vmem:[%s0] sm:$0xff]
    %v22 = vld [vmem:[%s1] sm:$0x1]
    %24 = vset.pattern.permute.xlu0 0
    %25 = vperm.xlu0 %24, %v21
    %v26 = vpop.permute.xlu0 %25
    %v28 = vlaneseq
    %v29 = vshrl.u32 %v28, 7
    %v30 = vsub.s32 0, %v29
    %v31 = vrot.slane %v22, %v30
    %v32 = vmul.f32 %v26, %v31
    %v33 = vld [vmem:[%s1 + $0x1] sm:$0x1]
    %34 = vset.pattern.permute.xlu0 1
    %35 = vperm.xlu0 %34, %v21
    %v36 = vpop.permute.xlu0 %35
    %v38 = vlaneseq
    %v39 = vshrl.u32 %v38, 7
    %v40 = vsub.s32 0, %v39
    %v41 = vrot.slane %v33, %v40
    %v42 = vmul.f32 %v36, %v41
    %v43 = vadd.f32 %v32, %v42
    %v44 = vld [vmem:[%s2] sm:$0x1]
    %v46 = vlaneseq
    %v47 = vshrl.u32 %v46, 7
    %v48 = vsub.s32 0, %v47
    %v49 = vrot.slane %v44, %v48
    %v51 = vadd.f32 %v43, %v49
    %v52 = vtanh.pop %v51
    %v53 = vld [vmem:[%s3] sm:$0xff]
    %v54 = vld [vmem:[%s3 + $0x8] sm:$0xff]
    %v55 = vld [vmem:[%s3 + $0x10] sm:$0xff]
    %v56 = vld [vmem:[%s3 + $0x18] sm:$0xff]
    %v57 = vld [vmem:[%s3 + $0x20] sm:$0xff]
    %v58 = vld [vmem:[%s3 + $0x28] sm:$0xff]
    %v59 = vld [vmem:[%s3 + $0x30] sm:$0xff]
    %v60 = vld [vmem:[%s3 + $0x38] sm:$0xff]
    %v61 = vld [vmem:[%s3 + $0x40] sm:$0xff]
    %v62 = vld [vmem:[%s3 + $0x48] sm:$0xff]
    %v63 = vld [vmem:[%s3 + $0x50] sm:$0xff]
    %v64 = vld [vmem:[%s3 + $0x58] sm:$0xff]
    %v65 = vld [vmem:[%s3 + $0x60] sm:$0xff]
    %v66 = vld [vmem:[%s3 + $0x68] sm:$0xff]
    %v67 = vld [vmem:[%s3 + $0x70] sm:$0xff]
    %v68 = vld [vmem:[%s3 + $0x78] sm:$0xff]
    %v69 = vld [vmem:[%s4] sm:$0x1]
    %v71 = vlaneseq
    %v72 = vshrl.u32 %v71, 7
    %v73 = vsub.s32 0, %v72
    %v74 = vrot.slane %v69, %v73
    %76 = vmatprep.subr.mxu0 0.0
    %77 = vmatpush1.msra.mxu0 %v53
    %78 = vmatprep.subr.mxu0 0.0
    %79 = vmatpush1.msra.mxu0 %v54
    %80 = vmatprep.subr.mxu0 0.0
    %81 = vmatpush1.msra.mxu0 %v55
    %82 = vmatprep.subr.mxu0 0.0
    %83 = vmatpush1.msra.mxu0 %v56
    %84 = vmatprep.subr.mxu0 0.0
    %85 = vmatpush1.msra.mxu0 %v57
    %86 = vmatprep.subr.mxu0 0.0
    %87 = vmatpush1.msra.mxu0 %v58
    %88 = vmatprep.subr.mxu0 0.0
    %89 = vmatpush1.msra.mxu0 %v59
    %90 = vmatprep.subr.mxu0 0.0
    %91 = vmatpush1.msra.mxu0 %v60
    %92 = vmatprep.subr.mxu0 0.0
    %93 = vmatpush1.msra.mxu0 %v61
    %94 = vmatprep.subr.mxu0 0.0
    %95 = vmatpush1.msra.mxu0 %v62
    %96 = vmatprep.subr.mxu0 0.0
    %97 = vmatpush1.msra.mxu0 %v63
    %98 = vmatprep.subr.mxu0 0.0
    %99 = vmatpush1.msra.mxu0 %v64
    %100 = vmatprep.subr.mxu0 0.0
    %101 = vmatpush1.msra.mxu0 %v65
    %102 = vmatprep.subr.mxu0 0.0
    %103 = vmatpush1.msra.mxu0 %v66
    %104 = vmatprep.subr.mxu0 0.0
    %105 = vmatpush1.msra.mxu0 %v67
    %106 = vmatprep.subr.mxu0 0.0
    %107 = vmatpush1.msra.mxu0 %v68
    %108 = vmatprep.subr.mxu0 0.0
    %109 = vmatpush1.msra.mxu0 0.0
    %110 = vmatprep.subr.mxu0 0.0
    %111 = vmatpush1.msra.mxu0 0.0
    %112 = vmatprep.subr.mxu0 0.0
    %113 = vmatpush1.msra.mxu0 0.0
    %114 = vmatprep.subr.mxu0 0.0
    %115 = vmatpush1.msra.mxu0 0.0
    %116 = vmatprep.subr.mxu0 0.0
    %117 = vmatpush1.msra.mxu0 0.0
    %118 = vmatprep.subr.mxu0 0.0
    %119 = vmatpush1.msra.mxu0 0.0
    %120 = vmatprep.subr.mxu0 0.0
    %121 = vmatpush1.msra.mxu0 0.0
    %122 = vmatprep.subr.mxu0 0.0
    %123 = vmatpush1.msra.mxu0 0.0
    %124 = vmatprep.subr.mxu0 0.0
    %125 = vmatpush1.msra.mxu0 0.0
    %126 = vmatprep.subr.mxu0 0.0
    %127 = vmatpush1.msra.mxu0 0.0
    %128 = vmatprep.subr.mxu0 0.0
    %129 = vmatpush1.msra.mxu0 0.0
    %130 = vmatprep.subr.mxu0 0.0
    %131 = vmatpush1.msra.mxu0 0.0
    %132 = vmatprep.subr.mxu0 0.0
    %133 = vmatpush1.msra.mxu0 0.0
    %134 = vmatprep.subr.mxu0 0.0
    %135 = vmatpush1.msra.mxu0 0.0
    %136 = vmatprep.subr.mxu0 0.0
    %137 = vmatpush1.msra.mxu0 0.0
    %138 = vmatprep.subr.mxu0 0.0
    %139 = vmatpush1.msra.mxu0 0.0
    %140 = vmatprep.mubr.f32.mxu0 0.0
    %141 = vmatmul.mubr.f32.gmra.mrb[0].mxu0 %v52
    %v142 = vpop.f32.mrb[0].mxu0
    %v143 = vadd.f32 %v74, %v142
    %v144 = vpop.f32.mrb[0].mxu0
    %145 = vdwg.mxu0
    %146 = vst [vmem:[#allocation2] sm:$0xff] %v143
    // Predicated region
    $region22: #{qfunction_forward.1} parent=1 // pred_check
      _
    $region23: #{qfunction_forward.1} parent=1 // pred_check_branch
      %148 = sbr.rel (0) target = $region25
    $region24: #{qfunction_forward.1} parent=1 // pred_region
      %s150 = ssub.s32 128, 128
      %151 = vsyncadd [#allocation3], %s150
      %s153 = sshll.u32 [#allocation2], 4
      %s154 = int_to_ptr.vmem [resolvable:$true] %s153
      %156 = dma.vmem_to_hbm [thread:$0]  %s154, 128, %s5, [#allocation3]
    $region25: #{qfunction_forward.1} parent=1 // pred_fallthru
      _
    // Predicated region
    $region26: #{qfunction_forward.1} parent=1 // pred_check
      _
    $region27: #{qfunction_forward.1} parent=1 // pred_check_branch
      %158 = sbr.rel (0) target = $region29
    $region28: #{qfunction_forward.1} parent=1 // pred_region
      %159 = dma.done [#allocation3], 128
    $region29: #{qfunction_forward.1} parent=1 // pred_fallthru
      _
    %160 = vsyncpa [#allocation3], 1

</llo_original>
